<compile_context>
chip_gen: v5e
topology: v5e:2x2
jax: 0.10.0
libtpu: 0.0.40
codegen_flags: <defaults>
</compile_context>

<pallas_src>
import jax
import jax.numpy as jnp
from jax.experimental import pallas as pl
from jax.experimental.pallas import tpu as pltpu


def _round_up(x, m):
    return ((x + m - 1) // m) * m


def _make_gru_step_kernel(n_layer, hidden_dim):
    H = hidden_dim

    def _sigmoid(x):
        # exp lives on the EUP; approx reciprocal also lands on the EUP slot
        # instead of a VPU divide.
        e = jnp.exp(-x)
        if hasattr(pl, "reciprocal"):
            return pl.reciprocal(1.0 + e, approx=True)
        return 1.0 / (1.0 + e)

    def kernel(*refs):
        x_ref, h_ref, m_ref = refs[:3]
        w_refs = refs[3:3 + 4 * n_layer]
        newh_ref = refs[3 + 4 * n_layer]

        tile_n = x_ref.shape[0]
        # Broadcast the mask to lane width ONCE (the unrolled layer loop would
        # otherwise re-emit the width-1 lane broadcast n_layer times).
        m_full = jnp.broadcast_to(m_ref[...], (tile_n, H))

        # Pre-issue all recurrent-path matmuls: gh[l] depends only on kernel
        # inputs, never on the previous layer's output, so the MXU pipelines
        # these pushes instead of serializing them with the layer chain.
        h_masked = []
        gh = []
        for l in range(n_layer):
            whh_ref = w_refs[4 * l + 1]
            bhh_ref = w_refs[4 * l + 3]
            h_m = h_ref[l] * m_full                      # fused episode-reset mask
            h_masked.append(h_m)
            gh.append(jnp.dot(h_m.astype(jnp.bfloat16), whh_ref[...],
                              preferred_element_type=jnp.float32) + bhh_ref[...])

        layer_in = x_ref[...]                            # (tile_n, in_dim), layer 0
        for l in range(n_layer):
            wih_ref = w_refs[4 * l]
            bih_ref = w_refs[4 * l + 2]
            gi = jnp.dot(layer_in.astype(jnp.bfloat16), wih_ref[...],
                         preferred_element_type=jnp.float32) + bih_ref[...]
            gh_l = gh[l]
            # torch gate order: [reset | update | new], lane-aligned 128-wide slices
            r = _sigmoid(gi[:, 0 * H:1 * H] + gh_l[:, 0 * H:1 * H])
            z = _sigmoid(gi[:, 1 * H:2 * H] + gh_l[:, 1 * H:2 * H])
            n = jnp.tanh(gi[:, 2 * H:3 * H] + r * gh_l[:, 2 * H:3 * H])
            h_new = (1.0 - z) * n + z * h_masked[l]
            newh_ref[l] = h_new.astype(newh_ref.dtype)
            layer_in = h_new                             # feeds next layer (eval: no dropout)
        # `out` == new_h[-1]; sliced in the wrapper -> no duplicate HBM writeback.

    return kernel


def rnn_encoder_forward(cnn_feature, rnn_hidden_state, masks, params):
    """Single GRU step (seq_len == 1), fused mask + n_layer cells in ONE pallas_call.

    cnn_feature: (N, input_dim) f32
    rnn_hidden_state: (n_layer, N, H) f32
    masks: (N, 1) f32
    params: list of n_layer tuples (w_ih (in,3H), w_hh (H,3H), b_ih (1,3H), b_hh (1,3H))
    Returns (out (N, H), new_hidden (n_layer, N, H)).
    """
    n, in_dim = cnn_feature.shape
    n_layer, n_h, hidden = rnn_hidden_state.shape
    assert n_h == n and masks.shape == (n, 1)

    # Row (batch) tiling.  Small batches stay a single resident block; larger
    # batches get >= 2 blocks (v7x dual-TC sharding via "parallel") with a
    # 512-row cap so the double-buffered block footprint stays well inside the
    # default scoped-VMEM limit on every chip (v5e 16 MiB, v6e/v7x 32 MiB).
    n8 = _round_up(n, 8)
    if n8 <= 256:
        tile_n = n8
    else:
        tile_n = min(512, _round_up(pl.cdiv(n8, 2), 8))
    n_pad = _round_up(n, tile_n)
    if n_pad != n:
        pad = n_pad - n
        cnn_feature = jnp.pad(cnn_feature, ((0, pad), (0, 0)))
        rnn_hidden_state = jnp.pad(rnn_hidden_state, ((0, 0), (0, pad), (0, 0)))
        masks = jnp.pad(masks, ((0, pad), (0, 0)))
    grid = (n_pad // tile_n,)

    # Weights streamed as bf16 (matmul operands only); biases stay f32.
    flat_w = []
    for (wih, whh, bih, bhh) in params:
        flat_w += [wih.astype(jnp.bfloat16), whh.astype(jnp.bfloat16),
                   bih.astype(jnp.float32), bhh.astype(jnp.float32)]

    # Grid-invariant index maps keep weights resident in VMEM across row blocks.
    # (At much larger n_layer/hidden, single-buffering these invariant refs
    #  would further halve their VMEM footprint on v7x; unnecessary here.)
    w_specs = [
        pl.BlockSpec(w.shape, lambda i, nd=w.ndim: (0,) * nd) for w in flat_w
    ]
    in_specs = [
        pl.BlockSpec((tile_n, in_dim), lambda i: (i, 0)),              # cnn_feature
        pl.BlockSpec((n_layer, tile_n, hidden), lambda i: (0, i, 0)),  # hidden state
        pl.BlockSpec((tile_n, 1), lambda i: (i, 0)),                   # masks
    ] + w_specs
    out_specs = pl.BlockSpec((n_layer, tile_n, hidden), lambda i: (0, i, 0))
    out_shape = jax.ShapeDtypeStruct((n_layer, n_pad, hidden), jnp.float32)

    kernel = _make_gru_step_kernel(n_layer, hidden)
    new_h = pl.pallas_call(
        kernel,
        out_shape=out_shape,
        grid=grid,
        in_specs=in_specs,
        out_specs=out_specs,
        compiler_params=pltpu.CompilerParams(
            dimension_semantics=("parallel",)),
    )(cnn_feature, rnn_hidden_state, masks, *flat_w)

    new_h = new_h[:, :n, :]
    return new_h[-1], new_h          # out == last layer's hidden (seq_len == 1)


def _orthogonal(key, rows, cols):
    # Semi-orthogonal matrix, like nn.init.orthogonal_ (sign-corrected QR).
    big, small = max(rows, cols), min(rows, cols)
    a = jax.random.normal(key, (big, small), dtype=jnp.float32)
    q, r = jnp.linalg.qr(a)
    q = q * jnp.sign(jnp.diagonal(r))
    if rows < cols:
        q = q.T
    return q


def init_gru_params(key, input_dim, hidden_dim, n_layer):
    params = []
    for l in range(n_layer):
        in_dim = input_dim if l == 0 else hidden_dim
        key, k1, k2, k3, k4 = jax.random.split(key, 5)
        # torch layout is (3H, in); init orthogonally there, store transposed (in, 3H).
        wih = _orthogonal(k1, 3 * hidden_dim, in_dim).T
        whh = _orthogonal(k2, 3 * hidden_dim, hidden_dim).T
        # RNN_encoder._init_weight zeroes biases; small random values here so the
        # numeric check exercises the full gate math (forward formula unchanged).
        bih = 0.1 * jax.random.normal(k3, (1, 3 * hidden_dim), dtype=jnp.float32)
        bhh = 0.1 * jax.random.normal(k4, (1, 3 * hidden_dim), dtype=jnp.float32)
        params.append((wih, whh, bih, bhh))
    return params


def gru_step_ref(x, h0, masks, params):
    # Pure-JAX f32 reference of the same math (torch GRU cell, seq_len == 1).
    def sigmoid(v):
        return 1.0 / (1.0 + jnp.exp(-v))

    h0 = masks * h0
    layer_in = x
    new_h = []
    for (wih, whh, bih, bhh) in params:
        h_prev = h0[len(new_h)]
        H = h_prev.shape[-1]
        gi = layer_in @ wih + bih
        gh = h_prev @ whh + bhh
        r = sigmoid(gi[:, :H] + gh[:, :H])
        z = sigmoid(gi[:, H:2 * H] + gh[:, H:2 * H])
        n_ = jnp.tanh(gi[:, 2 * H:] + r * gh[:, 2 * H:])
        h_new = (1.0 - z) * n_ + z * h_prev
        new_h.append(h_new)
        layer_in = h_new
    return layer_in, jnp.stack(new_h, axis=0)


if __name__ == "__main__":
    key = jax.random.PRNGKey(0)
    k_feat, k_h, k_mask, k_par = jax.random.split(key, 4)

    N = 8              # parallel envs (batch), sublane-aligned
    input_dim = 256    # CNN feature dim
    hidden_dim = 128   # lane-dense GRU width
    n_layer = 2

    cnn_feature = jax.random.normal(k_feat, (N, input_dim), dtype=jnp.float32)
    rnn_hidden_state = jax.random.normal(
        k_h, (n_layer, N, hidden_dim), dtype=jnp.float32)
    masks = (jax.random.uniform(k_mask, (N, 1)) > 0.25).astype(jnp.float32)

    params = init_gru_params(k_par, input_dim, hidden_dim, n_layer)

    out, new_h = rnn_encoder_forward(cnn_feature, rnn_hidden_state, masks, params)
    out, new_h = jax.block_until_ready((out, new_h))

    ref_out, ref_h = gru_step_ref(cnn_feature, rnn_hidden_state, masks, params)
    assert out.shape == (N, hidden_dim)
    assert new_h.shape == (n_layer, N, hidden_dim)
    # Tolerances loosened for bf16 weight storage (gate math stays f32).
    assert jnp.allclose(out, ref_out, atol=3e-2, rtol=3e-2)
    assert jnp.allclose(new_h, ref_h, atol=3e-2, rtol=3e-2)

    print("KERNEL_OK")
</pallas_src>

<mosaic_0001>
module attributes {stable_mosaic.version = 11 : i64} {
  func.func @kernel(%arg0: i32, %arg1: memref<8x256xf32, #tpu.memory_space<vmem>>, %arg2: memref<2x8x128xf32, #tpu.memory_space<vmem>>, %arg3: memref<8x1xf32, #tpu.memory_space<vmem>>, %arg4: memref<256x384xbf16, #tpu.memory_space<vmem>>, %arg5: memref<128x384xbf16, #tpu.memory_space<vmem>>, %arg6: memref<1x384xf32, #tpu.memory_space<vmem>>, %arg7: memref<1x384xf32, #tpu.memory_space<vmem>>, %arg8: memref<128x384xbf16, #tpu.memory_space<vmem>>, %arg9: memref<128x384xbf16, #tpu.memory_space<vmem>>, %arg10: memref<1x384xf32, #tpu.memory_space<vmem>>, %arg11: memref<1x384xf32, #tpu.memory_space<vmem>>, %arg12: memref<2x8x128xf32, #tpu.memory_space<vmem>>) attributes {dimension_semantics = [#tpu.dimension_semantics<parallel>], iteration_bounds = array<i64: 1>, scalar_prefetch = 0 : i64, scratch_operands = 0 : i64, tpu.core_type = #tpu.core_type<tc>, window_params = [{transform_indices = @transform_0, window_bounds = array<i64: 8, 256>}, {transform_indices = @transform_1, window_bounds = array<i64: 2, 8, 128>}, {transform_indices = @transform_2, window_bounds = array<i64: 8, 1>}, {pipeline_mode = #tpu.pipeline_mode<synchronous>, transform_indices = @transform_3, window_bounds = array<i64: 256, 384>}, {pipeline_mode = #tpu.pipeline_mode<synchronous>, transform_indices = @transform_4, window_bounds = array<i64: 128, 384>}, {pipeline_mode = #tpu.pipeline_mode<synchronous>, transform_indices = @transform_5, window_bounds = array<i64: 1, 384>}, {pipeline_mode = #tpu.pipeline_mode<synchronous>, transform_indices = @transform_6, window_bounds = array<i64: 1, 384>}, {pipeline_mode = #tpu.pipeline_mode<synchronous>, transform_indices = @transform_7, window_bounds = array<i64: 128, 384>}, {pipeline_mode = #tpu.pipeline_mode<synchronous>, transform_indices = @transform_8, window_bounds = array<i64: 128, 384>}, {pipeline_mode = #tpu.pipeline_mode<synchronous>, transform_indices = @transform_9, window_bounds = array<i64: 1, 384>}, {pipeline_mode = #tpu.pipeline_mode<synchronous>, transform_indices = @transform_10, window_bounds = array<i64: 1, 384>}, {transform_indices = @transform_11, window_bounds = array<i64: 2, 8, 128>}]} {
    %c0 = arith.constant 0 : index
    %c0_0 = arith.constant 0 : index
    %0 = vector.load %arg3[%c0, %c0_0] : memref<8x1xf32, #tpu.memory_space<vmem>>, vector<8x1xf32>
    %1 = vector.shape_cast %0 : vector<8x1xf32> to vector<8x1xf32>
    %2 = vector.broadcast %1 : vector<8x1xf32> to vector<8x128xf32>
    %c0_1 = arith.constant 0 : index
    %c0_2 = arith.constant 0 : index
    %c0_3 = arith.constant 0 : index
    %3 = vector.load %arg2[%c0_1, %c0_2, %c0_3] : memref<2x8x128xf32, #tpu.memory_space<vmem>>, vector<1x8x128xf32>
    %4 = vector.shape_cast %3 : vector<1x8x128xf32> to vector<8x128xf32>
    %5 = arith.mulf %4, %2 : vector<8x128xf32>
    %6 = arith.truncf %5 : vector<8x128xf32> to vector<8x128xbf16>
    %c0_4 = arith.constant 0 : index
    %c0_5 = arith.constant 0 : index
    %7 = vector.load %arg5[%c0_4, %c0_5] : memref<128x384xbf16, #tpu.memory_space<vmem>>, vector<128x384xbf16>
    %cst = arith.constant dense<0.000000e+00> : vector<8x384xf32>
    %8 = tpu.matmul %6, %7, %cst {dimension_numbers = #tpu.dot_dimension_numbers<[1], [0], [0], [1], [0, 0, 1, 1], [], []>} : vector<8x128xbf16>, vector<128x384xbf16>, vector<8x384xf32> -> vector<8x384xf32>
    %c0_6 = arith.constant 0 : index
    %c0_7 = arith.constant 0 : index
    %9 = vector.load %arg7[%c0_6, %c0_7] : memref<1x384xf32, #tpu.memory_space<vmem>>, vector<1x384xf32>
    %10 = vector.broadcast %9 : vector<1x384xf32> to vector<8x384xf32>
    %11 = arith.addf %8, %10 : vector<8x384xf32>
    %c1 = arith.constant 1 : index
    %c0_8 = arith.constant 0 : index
    %c0_9 = arith.constant 0 : index
    %12 = vector.load %arg2[%c1, %c0_8, %c0_9] : memref<2x8x128xf32, #tpu.memory_space<vmem>>, vector<1x8x128xf32>
    %13 = vector.shape_cast %12 : vector<1x8x128xf32> to vector<8x128xf32>
    %14 = arith.mulf %13, %2 : vector<8x128xf32>
    %15 = arith.truncf %14 : vector<8x128xf32> to vector<8x128xbf16>
    %c0_10 = arith.constant 0 : index
    %c0_11 = arith.constant 0 : index
    %16 = vector.load %arg9[%c0_10, %c0_11] : memref<128x384xbf16, #tpu.memory_space<vmem>>, vector<128x384xbf16>
    %cst_12 = arith.constant dense<0.000000e+00> : vector<8x384xf32>
    %17 = tpu.matmul %15, %16, %cst_12 {dimension_numbers = #tpu.dot_dimension_numbers<[1], [0], [0], [1], [0, 0, 1, 1], [], []>} : vector<8x128xbf16>, vector<128x384xbf16>, vector<8x384xf32> -> vector<8x384xf32>
    %c0_13 = arith.constant 0 : index
    %c0_14 = arith.constant 0 : index
    %18 = vector.load %arg11[%c0_13, %c0_14] : memref<1x384xf32, #tpu.memory_space<vmem>>, vector<1x384xf32>
    %19 = vector.broadcast %18 : vector<1x384xf32> to vector<8x384xf32>
    %20 = arith.addf %17, %19 : vector<8x384xf32>
    %c0_15 = arith.constant 0 : index
    %c0_16 = arith.constant 0 : index
    %21 = vector.load %arg1[%c0_15, %c0_16] : memref<8x256xf32, #tpu.memory_space<vmem>>, vector<8x256xf32>
    %22 = arith.truncf %21 : vector<8x256xf32> to vector<8x256xbf16>
    %c0_17 = arith.constant 0 : index
    %c0_18 = arith.constant 0 : index
    %23 = vector.load %arg4[%c0_17, %c0_18] : memref<256x384xbf16, #tpu.memory_space<vmem>>, vector<256x384xbf16>
    %cst_19 = arith.constant dense<0.000000e+00> : vector<8x384xf32>
    %24 = tpu.matmul %22, %23, %cst_19 {dimension_numbers = #tpu.dot_dimension_numbers<[1], [0], [0], [1], [0, 0, 1, 1], [], []>} : vector<8x256xbf16>, vector<256x384xbf16>, vector<8x384xf32> -> vector<8x384xf32>
    %c0_20 = arith.constant 0 : index
    %c0_21 = arith.constant 0 : index
    %25 = vector.load %arg6[%c0_20, %c0_21] : memref<1x384xf32, #tpu.memory_space<vmem>>, vector<1x384xf32>
    %26 = vector.broadcast %25 : vector<1x384xf32> to vector<8x384xf32>
    %27 = arith.addf %24, %26 : vector<8x384xf32>
    %28 = vector.extract_strided_slice %27 {offsets = [0, 0], sizes = [8, 128], strides = [1, 1]} : vector<8x384xf32> to vector<8x128xf32>
    %29 = vector.extract_strided_slice %11 {offsets = [0, 0], sizes = [8, 128], strides = [1, 1]} : vector<8x384xf32> to vector<8x128xf32>
    %30 = arith.addf %28, %29 : vector<8x128xf32>
    %cst_22 = arith.constant 0.000000e+00 : f32
    %31 = vector.broadcast %cst_22 : f32 to vector<8x128xf32>
    %32 = arith.subf %31, %30 : vector<8x128xf32>
    %33 = math.exp %32 : vector<8x128xf32>
    %cst_23 = arith.constant 1.000000e+00 : f32
    %34 = vector.broadcast %cst_23 : f32 to vector<8x128xf32>
    %35 = arith.addf %34, %33 : vector<8x128xf32>
    %36 = tpu.reciprocal %35 {approx = true} : vector<8x128xf32> -> vector<8x128xf32>
    %37 = vector.extract_strided_slice %27 {offsets = [0, 128], sizes = [8, 128], strides = [1, 1]} : vector<8x384xf32> to vector<8x128xf32>
    %38 = vector.extract_strided_slice %11 {offsets = [0, 128], sizes = [8, 128], strides = [1, 1]} : vector<8x384xf32> to vector<8x128xf32>
    %39 = arith.addf %37, %38 : vector<8x128xf32>
    %cst_24 = arith.constant 0.000000e+00 : f32
    %40 = vector.broadcast %cst_24 : f32 to vector<8x128xf32>
    %41 = arith.subf %40, %39 : vector<8x128xf32>
    %42 = math.exp %41 : vector<8x128xf32>
    %cst_25 = arith.constant 1.000000e+00 : f32
    %43 = vector.broadcast %cst_25 : f32 to vector<8x128xf32>
    %44 = arith.addf %43, %42 : vector<8x128xf32>
    %45 = tpu.reciprocal %44 {approx = true} : vector<8x128xf32> -> vector<8x128xf32>
    %46 = vector.extract_strided_slice %27 {offsets = [0, 256], sizes = [8, 128], strides = [1, 1]} : vector<8x384xf32> to vector<8x128xf32>
    %47 = vector.extract_strided_slice %11 {offsets = [0, 256], sizes = [8, 128], strides = [1, 1]} : vector<8x384xf32> to vector<8x128xf32>
    %48 = arith.mulf %36, %47 : vector<8x128xf32>
    %49 = arith.addf %46, %48 : vector<8x128xf32>
    %50 = math.tanh %49 : vector<8x128xf32>
    %cst_26 = arith.constant 1.000000e+00 : f32
    %51 = vector.broadcast %cst_26 : f32 to vector<8x128xf32>
    %52 = arith.subf %51, %45 : vector<8x128xf32>
    %53 = arith.mulf %52, %50 : vector<8x128xf32>
    %54 = arith.mulf %45, %5 : vector<8x128xf32>
    %55 = arith.addf %53, %54 : vector<8x128xf32>
    %c0_27 = arith.constant 0 : index
    %c0_28 = arith.constant 0 : index
    %c0_29 = arith.constant 0 : index
    %56 = vector.load %arg12[%c0_27, %c0_28, %c0_29] : memref<2x8x128xf32, #tpu.memory_space<vmem>>, vector<1x8x128xf32>
    %57 = vector.shape_cast %56 : vector<1x8x128xf32> to vector<8x128xf32>
    %58 = vector.shape_cast %55 : vector<8x128xf32> to vector<1x8x128xf32>
    tpu.vector_store %arg12[%c0_27, %c0_28, %c0_29], %58 {strides = array<i32>} : memref<2x8x128xf32, #tpu.memory_space<vmem>>, vector<1x8x128xf32>,
    %59 = arith.truncf %55 : vector<8x128xf32> to vector<8x128xbf16>
    %c0_30 = arith.constant 0 : index
    %c0_31 = arith.constant 0 : index
    %60 = vector.load %arg8[%c0_30, %c0_31] : memref<128x384xbf16, #tpu.memory_space<vmem>>, vector<128x384xbf16>
    %cst_32 = arith.constant dense<0.000000e+00> : vector<8x384xf32>
    %61 = tpu.matmul %59, %60, %cst_32 {dimension_numbers = #tpu.dot_dimension_numbers<[1], [0], [0], [1], [0, 0, 1, 1], [], []>} : vector<8x128xbf16>, vector<128x384xbf16>, vector<8x384xf32> -> vector<8x384xf32>
    %c0_33 = arith.constant 0 : index
    %c0_34 = arith.constant 0 : index
    %62 = vector.load %arg10[%c0_33, %c0_34] : memref<1x384xf32, #tpu.memory_space<vmem>>, vector<1x384xf32>
    %63 = vector.broadcast %62 : vector<1x384xf32> to vector<8x384xf32>
    %64 = arith.addf %61, %63 : vector<8x384xf32>
    %65 = vector.extract_strided_slice %64 {offsets = [0, 0], sizes = [8, 128], strides = [1, 1]} : vector<8x384xf32> to vector<8x128xf32>
    %66 = vector.extract_strided_slice %20 {offsets = [0, 0], sizes = [8, 128], strides = [1, 1]} : vector<8x384xf32> to vector<8x128xf32>
    %67 = arith.addf %65, %66 : vector<8x128xf32>
    %cst_35 = arith.constant 0.000000e+00 : f32
    %68 = vector.broadcast %cst_35 : f32 to vector<8x128xf32>
    %69 = arith.subf %68, %67 : vector<8x128xf32>
    %70 = math.exp %69 : vector<8x128xf32>
    %cst_36 = arith.constant 1.000000e+00 : f32
    %71 = vector.broadcast %cst_36 : f32 to vector<8x128xf32>
    %72 = arith.addf %71, %70 : vector<8x128xf32>
    %73 = tpu.reciprocal %72 {approx = true} : vector<8x128xf32> -> vector<8x128xf32>
    %74 = vector.extract_strided_slice %64 {offsets = [0, 128], sizes = [8, 128], strides = [1, 1]} : vector<8x384xf32> to vector<8x128xf32>
    %75 = vector.extract_strided_slice %20 {offsets = [0, 128], sizes = [8, 128], strides = [1, 1]} : vector<8x384xf32> to vector<8x128xf32>
    %76 = arith.addf %74, %75 : vector<8x128xf32>
    %cst_37 = arith.constant 0.000000e+00 : f32
    %77 = vector.broadcast %cst_37 : f32 to vector<8x128xf32>
    %78 = arith.subf %77, %76 : vector<8x128xf32>
    %79 = math.exp %78 : vector<8x128xf32>
    %cst_38 = arith.constant 1.000000e+00 : f32
    %80 = vector.broadcast %cst_38 : f32 to vector<8x128xf32>
    %81 = arith.addf %80, %79 : vector<8x128xf32>
    %82 = tpu.reciprocal %81 {approx = true} : vector<8x128xf32> -> vector<8x128xf32>
    %83 = vector.extract_strided_slice %64 {offsets = [0, 256], sizes = [8, 128], strides = [1, 1]} : vector<8x384xf32> to vector<8x128xf32>
    %84 = vector.extract_strided_slice %20 {offsets = [0, 256], sizes = [8, 128], strides = [1, 1]} : vector<8x384xf32> to vector<8x128xf32>
    %85 = arith.mulf %73, %84 : vector<8x128xf32>
    %86 = arith.addf %83, %85 : vector<8x128xf32>
    %87 = math.tanh %86 : vector<8x128xf32>
    %cst_39 = arith.constant 1.000000e+00 : f32
    %88 = vector.broadcast %cst_39 : f32 to vector<8x128xf32>
    %89 = arith.subf %88, %82 : vector<8x128xf32>
    %90 = arith.mulf %89, %87 : vector<8x128xf32>
    %91 = arith.mulf %82, %14 : vector<8x128xf32>
    %92 = arith.addf %90, %91 : vector<8x128xf32>
    %c1_40 = arith.constant 1 : index
    %c0_41 = arith.constant 0 : index
    %c0_42 = arith.constant 0 : index
    %93 = vector.load %arg12[%c1_40, %c0_41, %c0_42] : memref<2x8x128xf32, #tpu.memory_space<vmem>>, vector<1x8x128xf32>
    %94 = vector.shape_cast %93 : vector<1x8x128xf32> to vector<8x128xf32>
    %95 = vector.shape_cast %92 : vector<8x128xf32> to vector<1x8x128xf32>
    tpu.vector_store %arg12[%c1_40, %c0_41, %c0_42], %95 {strides = array<i32>} : memref<2x8x128xf32, #tpu.memory_space<vmem>>, vector<1x8x128xf32>,
    return
  }
  func.func @transform_0(%arg0: i32) -> (i32, i32) {
    %c0_i32 = arith.constant 0 : i32
    %c0_i32_0 = arith.constant 0 : i32
    return %arg0, %c0_i32 : i32, i32
  }
  func.func @transform_1(%arg0: i32) -> (i32, i32, i32) {
    %c0_i32 = arith.constant 0 : i32
    %c0_i32_0 = arith.constant 0 : i32
    %c0_i32_1 = arith.constant 0 : i32
    return %c0_i32, %arg0, %c0_i32_0 : i32, i32, i32
  }
  func.func @transform_2(%arg0: i32) -> (i32, i32) {
    %c0_i32 = arith.constant 0 : i32
    %c0_i32_0 = arith.constant 0 : i32
    return %arg0, %c0_i32 : i32, i32
  }
  func.func @transform_3(%arg0: i32) -> (i32, i32) {
    %c0_i32 = arith.constant 0 : i32
    %c0_i32_0 = arith.constant 0 : i32
    %c0_i32_1 = arith.constant 0 : i32
    return %c0_i32, %c0_i32_0 : i32, i32
  }
  func.func @transform_4(%arg0: i32) -> (i32, i32) {
    %c0_i32 = arith.constant 0 : i32
    %c0_i32_0 = arith.constant 0 : i32
    %c0_i32_1 = arith.constant 0 : i32
    return %c0_i32, %c0_i32_0 : i32, i32
  }
  func.func @transform_5(%arg0: i32) -> (i32, i32) {
    %c0_i32 = arith.constant 0 : i32
    %c0_i32_0 = arith.constant 0 : i32
    %c0_i32_1 = arith.constant 0 : i32
    return %c0_i32, %c0_i32_0 : i32, i32
  }
  func.func @transform_6(%arg0: i32) -> (i32, i32) {
    %c0_i32 = arith.constant 0 : i32
    %c0_i32_0 = arith.constant 0 : i32
    %c0_i32_1 = arith.constant 0 : i32
    return %c0_i32, %c0_i32_0 : i32, i32
  }
  func.func @transform_7(%arg0: i32) -> (i32, i32) {
    %c0_i32 = arith.constant 0 : i32
    %c0_i32_0 = arith.constant 0 : i32
    %c0_i32_1 = arith.constant 0 : i32
    return %c0_i32, %c0_i32_0 : i32, i32
  }
  func.func @transform_8(%arg0: i32) -> (i32, i32) {
    %c0_i32 = arith.constant 0 : i32
    %c0_i32_0 = arith.constant 0 : i32
    %c0_i32_1 = arith.constant 0 : i32
    return %c0_i32, %c0_i32_0 : i32, i32
  }
  func.func @transform_9(%arg0: i32) -> (i32, i32) {
    %c0_i32 = arith.constant 0 : i32
    %c0_i32_0 = arith.constant 0 : i32
    %c0_i32_1 = arith.constant 0 : i32
    return %c0_i32, %c0_i32_0 : i32, i32
  }
  func.func @transform_10(%arg0: i32) -> (i32, i32) {
    %c0_i32 = arith.constant 0 : i32
    %c0_i32_0 = arith.constant 0 : i32
    %c0_i32_1 = arith.constant 0 : i32
    return %c0_i32, %c0_i32_0 : i32, i32
  }
  func.func @transform_11(%arg0: i32) -> (i32, i32, i32) {
    %c0_i32 = arith.constant 0 : i32
    %c0_i32_0 = arith.constant 0 : i32
    %c0_i32_1 = arith.constant 0 : i32
    return %c0_i32, %arg0, %c0_i32_0 : i32, i32, i32
  }
}

</mosaic_0001>

<llo_original>
// kernel: tpu_custom_call.1
$region0: #{tpu_custom_call.1}
  #allocation0 [shape = 'u32[]', space=smem, size = 0x4, offset = 0x4, fixed_abs, tag = 'smem constant byte address 0x4 - core index']
  #allocation1 [shape = 'u32[72,128]{1,0:T(1,128)}', space=vmem, size = 0x9000, scoped, tag = 'internal scratch']
  %s0 = inlined_call_operand.hbm [shape: f32[8,256], index: 0, kind: input, shape index: {}]
  %s1 = inlined_call_operand.hbm [shape: f32[2,8,128], index: 1, kind: input, shape index: {}]
  %s2 = inlined_call_operand.vmem [shape: f32[8,1], index: 2, kind: input, shape index: {}]
  %s3 = inlined_call_operand.hbm [shape: bf16[256,384], index: 3, kind: input, shape index: {}]
  %s4 = inlined_call_operand.hbm [shape: bf16[128,384], index: 4, kind: input, shape index: {}]
  %s5 = inlined_call_operand.vmem [shape: f32[1,384], index: 5, kind: input, shape index: {}]
  %s6 = inlined_call_operand.vmem [shape: f32[1,384], index: 6, kind: input, shape index: {}]
  %s7 = inlined_call_operand.hbm [shape: bf16[128,384], index: 7, kind: input, shape index: {}]
  %s8 = inlined_call_operand.hbm [shape: bf16[128,384], index: 8, kind: input, shape index: {}]
  %s9 = inlined_call_operand.vmem [shape: f32[1,384], index: 9, kind: input, shape index: {}]
  %s10 = inlined_call_operand.vmem [shape: f32[1,384], index: 10, kind: input, shape index: {}]
  %s11 = inlined_call_operand.hbm [shape: f32[2,8,128], index: 11, kind: output, shape index: {}]
  %s12 = sld [smem:[#allocation0]]
  $region78: #{tpu_custom_call.1} parent=0
    _
  %s14 = ssub.s32 1, %s12
  %s15 = scalar_select 0, %s14, %s12
  $region1: #{tpu_custom_call.1} parent=0
    #allocation2 [shape = 'u8[8192]{0}', space=vmem, size = 0x2000, scoped, tag = 'input window, operand 0, single buffered']
    #allocation3 [shape = 's32[1]{0}', space=sflag, size = 0x4, scoped, tag = 'scoped memory for tpu_custom_call.1']
    #allocation4 [shape = 's32[1]{0}', space=sflag, size = 0x4, scoped, tag = 'scoped memory for tpu_custom_call.1']
    #allocation5 [shape = 'u8[8192]{0}', space=vmem, size = 0x2000, scoped, tag = 'input window, operand 1, single buffered']
    #allocation6 [shape = 's32[1]{0}', space=sflag, size = 0x4, scoped, tag = 'scoped memory for tpu_custom_call.1']
    #allocation7 [shape = 'u8[196608]{0}', space=vmem, size = 0x30000, scoped, tag = 'input window, operand 3, single buffered']
    #allocation8 [shape = 'u8[98304]{0}', space=vmem, size = 0x18000, scoped, tag = 'input window, operand 4, single buffered']
    #allocation9 [shape = 's32[1]{0}', space=sflag, size = 0x4, scoped, tag = 'scoped memory for tpu_custom_call.1']
    #allocation10 [shape = 'u8[98304]{0}', space=vmem, size = 0x18000, scoped, tag = 'input window, operand 7, single buffered']
    #allocation11 [shape = 'u8[98304]{0}', space=vmem, size = 0x18000, scoped, tag = 'input window, operand 8, single buffered']
    #allocation12 [shape = 's32[1]{0}', space=sflag, size = 0x4, scoped, tag = 'scoped memory for tpu_custom_call.1']
    #allocation13 [shape = 'u8[8192]{0}', space=vmem, size = 0x2000, scoped, tag = 'output window, operand 0, single buffered']
    %16 = vsyncpa [#allocation3], 0
    %17 = vsyncpa [#allocation6], 0
    %18 = vsyncpa [#allocation9], 0
    %19 = vsyncpa [#allocation12], 0
    %20 = vsyncpa [#allocation4], 0
    // Predicated region
    $region2: #{tpu_custom_call.1} parent=1 // pred_check
      _
    $region3: #{tpu_custom_call.1} parent=1 // pred_check_branch
      %22 = sbr.rel (0) target = $region5
    $region4: #{tpu_custom_call.1} parent=1 // pred_region
      %24 = vsyncadd [#allocation3], 0
      %s26 = sshll.u32 %s0, 4
      %s27 = int_to_ptr.hbm [resolvable:$true] %s26
      %s28 = sshll.u32 [#allocation2], 4
      %s29 = int_to_ptr.vmem [resolvable:$true] %s28
      %31 = dma.hbm_to_vmem [thread:$0]  %s27, 256, %s29, [#allocation3]
    $region5: #{tpu_custom_call.1} parent=1 // pred_fallthru
      _
    // Predicated region
    $region6: #{tpu_custom_call.1} parent=1 // pred_check
      _
    $region7: #{tpu_custom_call.1} parent=1 // pred_check_branch
      %33 = sbr.rel (0) target = $region9
    $region8: #{tpu_custom_call.1} parent=1 // pred_region
      %35 = vsyncadd [#allocation6], 0
      %s36 = sshll.u32 %s1, 4
      %s37 = int_to_ptr.hbm [resolvable:$true] %s36
      %s38 = sshll.u32 [#allocation5], 4
      %s39 = int_to_ptr.vmem [resolvable:$true] %s38
      %44 = dma.hbm_to_vmem [thread:$0]  %s37, 256, %s39, [#allocation6], 128, 128, 8
    $region9: #{tpu_custom_call.1} parent=1 // pred_fallthru
      _
    // Predicated region
    $region10: #{tpu_custom_call.1} parent=1 // pred_check
      _
    $region11: #{tpu_custom_call.1} parent=1 // pred_check_branch
      %46 = sbr.rel (0) target = $region13
    $region12: #{tpu_custom_call.1} parent=1 // pred_region
      _
    $region13: #{tpu_custom_call.1} parent=1 // pred_fallthru
      _
    // Predicated region
    $region14: #{tpu_custom_call.1} parent=1 // pred_check
      _
    $region15: #{tpu_custom_call.1} parent=1 // pred_check_branch
      %48 = sbr.rel (0) target = $region17
    $region16: #{tpu_custom_call.1} parent=1 // pred_region
      %50 = vsyncadd [#allocation6], 0
      %s51 = sshll.u32 %s3, 4
      %s52 = int_to_ptr.hbm [resolvable:$true] %s51
      %s53 = sshll.u32 [#allocation7], 4
      %s54 = int_to_ptr.vmem [resolvable:$true] %s53
      %59 = dma.hbm_to_vmem [thread:$0]  %s52, 6144, %s54, [#allocation6], 192, 192, 12
    $region17: #{tpu_custom_call.1} parent=1 // pred_fallthru
      _
    // Predicated region
    $region18: #{tpu_custom_call.1} parent=1 // pred_check
      _
    $region19: #{tpu_custom_call.1} parent=1 // pred_check_branch
      %61 = sbr.rel (0) target = $region21
    $region20: #{tpu_custom_call.1} parent=1 // pred_region
      %63 = vsyncadd [#allocation9], 0
      %s64 = sshll.u32 %s4, 4
      %s65 = int_to_ptr.hbm [resolvable:$true] %s64
      %s66 = sshll.u32 [#allocation8], 4
      %s67 = int_to_ptr.vmem [resolvable:$true] %s66
      %72 = dma.hbm_to_vmem [thread:$0]  %s65, 3072, %s67, [#allocation9], 192, 192, 12
    $region21: #{tpu_custom_call.1} parent=1 // pred_fallthru
      _
    // Predicated region
    $region22: #{tpu_custom_call.1} parent=1 // pred_check
      _
    $region23: #{tpu_custom_call.1} parent=1 // pred_check_branch
      %74 = sbr.rel (0) target = $region25
    $region24: #{tpu_custom_call.1} parent=1 // pred_region
      _
    $region25: #{tpu_custom_call.1} parent=1 // pred_fallthru
      _
    // Predicated region
    $region26: #{tpu_custom_call.1} parent=1 // pred_check
      _
    $region27: #{tpu_custom_call.1} parent=1 // pred_check_branch
      %76 = sbr.rel (0) target = $region29
    $region28: #{tpu_custom_call.1} parent=1 // pred_region
      _
    $region29: #{tpu_custom_call.1} parent=1 // pred_fallthru
      _
    // Predicated region
    $region30: #{tpu_custom_call.1} parent=1 // pred_check
      _
    $region31: #{tpu_custom_call.1} parent=1 // pred_check_branch
      %78 = sbr.rel (0) target = $region33
    $region32: #{tpu_custom_call.1} parent=1 // pred_region
      %80 = vsyncadd [#allocation9], 0
      %s81 = sshll.u32 %s7, 4
      %s82 = int_to_ptr.hbm [resolvable:$true] %s81
      %s83 = sshll.u32 [#allocation10], 4
      %s84 = int_to_ptr.vmem [resolvable:$true] %s83
      %89 = dma.hbm_to_vmem [thread:$0]  %s82, 3072, %s84, [#allocation9], 192, 192, 12
    $region33: #{tpu_custom_call.1} parent=1 // pred_fallthru
      _
    // Predicated region
    $region34: #{tpu_custom_call.1} parent=1 // pred_check
      _
    $region35: #{tpu_custom_call.1} parent=1 // pred_check_branch
      %91 = sbr.rel (0) target = $region37
    $region36: #{tpu_custom_call.1} parent=1 // pred_region
      %93 = vsyncadd [#allocation12], 0
      %s94 = sshll.u32 %s8, 4
      %s95 = int_to_ptr.hbm [resolvable:$true] %s94
      %s96 = sshll.u32 [#allocation11], 4
      %s97 = int_to_ptr.vmem [resolvable:$true] %s96
      %102 = dma.hbm_to_vmem [thread:$0]  %s95, 3072, %s97, [#allocation12], 192, 192, 12
    $region37: #{tpu_custom_call.1} parent=1 // pred_fallthru
      _
    // Predicated region
    $region38: #{tpu_custom_call.1} parent=1 // pred_check
      _
    $region39: #{tpu_custom_call.1} parent=1 // pred_check_branch
      %104 = sbr.rel (0) target = $region41
    $region40: #{tpu_custom_call.1} parent=1 // pred_region
      _
    $region41: #{tpu_custom_call.1} parent=1 // pred_fallthru
      _
    // Predicated region
    $region42: #{tpu_custom_call.1} parent=1 // pred_check
      _
    $region43: #{tpu_custom_call.1} parent=1 // pred_check_branch
      %106 = sbr.rel (0) target = $region45
    $region44: #{tpu_custom_call.1} parent=1 // pred_region
      _
    $region45: #{tpu_custom_call.1} parent=1 // pred_fallthru
      _
    // Predicated region
    $region46: #{tpu_custom_call.1} parent=1 // pred_check
      _
    $region47: #{tpu_custom_call.1} parent=1 // pred_check_branch
      %108 = sbr.rel (0) target = $region49
    $region48: #{tpu_custom_call.1} parent=1 // pred_region
      %110 = dma.done [#allocation3], 256
    $region49: #{tpu_custom_call.1} parent=1 // pred_fallthru
      _
    // Predicated region
    $region50: #{tpu_custom_call.1} parent=1 // pred_check
      _
    $region51: #{tpu_custom_call.1} parent=1 // pred_check_branch
      %112 = sbr.rel (0) target = $region53
    $region52: #{tpu_custom_call.1} parent=1 // pred_region
      %114 = dma.done [#allocation6], 256
    $region53: #{tpu_custom_call.1} parent=1 // pred_fallthru
      _
    // Predicated region
    $region54: #{tpu_custom_call.1} parent=1 // pred_check
      _
    $region55: #{tpu_custom_call.1} parent=1 // pred_check_branch
      %116 = sbr.rel (0) target = $region57
    $region56: #{tpu_custom_call.1} parent=1 // pred_region
      %118 = dma.done [#allocation6], 6144
    $region57: #{tpu_custom_call.1} parent=1 // pred_fallthru
      _
    // Predicated region
    $region58: #{tpu_custom_call.1} parent=1 // pred_check
      _
    $region59: #{tpu_custom_call.1} parent=1 // pred_check_branch
      %120 = sbr.rel (0) target = $region61
    $region60: #{tpu_custom_call.1} parent=1 // pred_region
      %122 = dma.done [#allocation9], 3072
    $region61: #{tpu_custom_call.1} parent=1 // pred_fallthru
      _
    // Predicated region
    $region62: #{tpu_custom_call.1} parent=1 // pred_check
      _
    $region63: #{tpu_custom_call.1} parent=1 // pred_check_branch
      %124 = sbr.rel (0) target = $region65
    $region64: #{tpu_custom_call.1} parent=1 // pred_region
      %126 = dma.done [#allocation9], 3072
    $region65: #{tpu_custom_call.1} parent=1 // pred_fallthru
      _
    // Predicated region
    $region66: #{tpu_custom_call.1} parent=1 // pred_check
      _
    $region67: #{tpu_custom_call.1} parent=1 // pred_check_branch
      %128 = sbr.rel (0) target = $region69
    $region68: #{tpu_custom_call.1} parent=1 // pred_region
      %130 = dma.done [#allocation12], 3072
    $region69: #{tpu_custom_call.1} parent=1 // pred_fallthru
      _
    %v131 = vld [vmem:[%s2] sm:$0xff]
    %133 = vset.pattern.permute.xlu0 0
    %134 = vperm.xlu0 %133, %v131
    %v135 = vpop.permute.xlu0 %134
    %v137 = vld [vmem:[#allocation5] sm:$0xff]
    %v138 = vmul.f32 %v137, %v135
    %v139 = vpack.c.bf16 %v138, %v138
    %v140 = vld [vmem:[#allocation8] sm:$0xff]
    %v141 = vld [vmem:[#allocation8 + $0x8] sm:$0xf]
    %v142 = vld [vmem:[#allocation8 + $0xc] sm:$0xff]
    %v143 = vld [vmem:[#allocation8 + $0x14] sm:$0xf]
    %v144 = vld [vmem:[#allocation8 + $0x18] sm:$0xff]
    %v145 = vld [vmem:[#allocation8 + $0x20] sm:$0xf]
    %v146 = vld [vmem:[#allocation8 + $0x24] sm:$0xff]
    %v147 = vld [vmem:[#allocation8 + $0x2c] sm:$0xf]
    %v148 = vld [vmem:[#allocation8 + $0x30] sm:$0xff]
    %v149 = vld [vmem:[#allocation8 + $0x38] sm:$0xf]
    %v150 = vld [vmem:[#allocation8 + $0x3c] sm:$0xff]
    %v151 = vld [vmem:[#allocation8 + $0x44] sm:$0xf]
    %v152 = vld [vmem:[#allocation8 + $0x48] sm:$0xff]
    %v153 = vld [vmem:[#allocation8 + $0x50] sm:$0xf]
    %v154 = vld [vmem:[#allocation8 + $0x54] sm:$0xff]
    %v155 = vld [vmem:[#allocation8 + $0x5c] sm:$0xf]
    %v156 = vld [vmem:[#allocation8 + $0x60] sm:$0xff]
    %v157 = vld [vmem:[#allocation8 + $0x68] sm:$0xf]
    %v158 = vld [vmem:[#allocation8 + $0x6c] sm:$0xff]
    %v159 = vld [vmem:[#allocation8 + $0x74] sm:$0xf]
    %v160 = vld [vmem:[#allocation8 + $0x78] sm:$0xff]
    %v161 = vld [vmem:[#allocation8 + $0x80] sm:$0xf]
    %v162 = vld [vmem:[#allocation8 + $0x84] sm:$0xff]
    %v163 = vld [vmem:[#allocation8 + $0x8c] sm:$0xf]
    %v164 = vld [vmem:[#allocation8 + $0x90] sm:$0xff]
    %v165 = vld [vmem:[#allocation8 + $0x98] sm:$0xf]
    %v166 = vld [vmem:[#allocation8 + $0x9c] sm:$0xff]
    %v167 = vld [vmem:[#allocation8 + $0xa4] sm:$0xf]
    %v168 = vld [vmem:[#allocation8 + $0xa8] sm:$0xff]
    %v169 = vld [vmem:[#allocation8 + $0xb0] sm:$0xf]
    %v170 = vld [vmem:[#allocation8 + $0xb4] sm:$0xff]
    %v171 = vld [vmem:[#allocation8 + $0xbc] sm:$0xf]
    %v172 = vld [vmem:[%s6] sm:$0x7]
    %v174 = vperm.slane %v172, 0
    %v175 = vperm.slane %v172, 1
    %v176 = vperm.slane %v172, 2
    %v212 = vunpack.c.l.b16 %v140
    %v213 = vunpack.c.h.b16 %v140
    %v214 = vunpack.c.l.b16 %v141
    %v215 = vunpack.c.l.b16 %v142
    %v216 = vunpack.c.h.b16 %v142
    %v217 = vunpack.c.l.b16 %v143
    %v218 = vunpack.c.l.b16 %v144
    %v219 = vunpack.c.h.b16 %v144
    %v220 = vunpack.c.l.b16 %v145
    %v221 = vunpack.c.l.b16 %v146
    %v222 = vunpack.c.h.b16 %v146
    %v223 = vunpack.c.l.b16 %v147
    %v224 = vunpack.c.l.b16 %v148
    %v225 = vunpack.c.h.b16 %v148
    %v226 = vunpack.c.l.b16 %v149
    %v227 = vunpack.c.l.b16 %v150
    %v228 = vunpack.c.h.b16 %v150
    %v229 = vunpack.c.l.b16 %v151
    %v230 = vunpack.c.l.b16 %v152
    %v231 = vunpack.c.h.b16 %v152
    %v232 = vunpack.c.l.b16 %v153
    %v233 = vunpack.c.l.b16 %v154
    %v234 = vunpack.c.h.b16 %v154
    %v235 = vunpack.c.l.b16 %v155
    %v236 = vunpack.c.l.b16 %v156
    %v237 = vunpack.c.h.b16 %v156
    %v238 = vunpack.c.l.b16 %v157
    %v239 = vunpack.c.l.b16 %v158
    %v240 = vunpack.c.h.b16 %v158
    %v241 = vunpack.c.l.b16 %v159
    %v242 = vunpack.c.l.b16 %v160
    %v243 = vunpack.c.h.b16 %v160
    %v244 = vunpack.c.l.b16 %v161
    %v245 = vunpack.c.l.b16 %v162
    %v246 = vunpack.c.h.b16 %v162
    %v247 = vunpack.c.l.b16 %v163
    %v248 = vunpack.c.l.b16 %v164
    %v249 = vunpack.c.h.b16 %v164
    %v250 = vunpack.c.l.b16 %v165
    %v251 = vunpack.c.l.b16 %v166
    %v252 = vunpack.c.h.b16 %v166
    %v253 = vunpack.c.l.b16 %v167
    %v254 = vunpack.c.l.b16 %v168
    %v255 = vunpack.c.h.b16 %v168
    %v256 = vunpack.c.l.b16 %v169
    %v257 = vunpack.c.l.b16 %v170
    %v258 = vunpack.c.h.b16 %v170
    %v259 = vunpack.c.l.b16 %v171
    %v260 = vpack.c.b16 %v215, %v212
    %v261 = vpack.c.b16 %v216, %v213
    %v262 = vpack.c.b16 %v217, %v214
    %v263 = vpack.c.b16 %v221, %v218
    %v264 = vpack.c.b16 %v222, %v219
    %v265 = vpack.c.b16 %v223, %v220
    %v266 = vpack.c.b16 %v227, %v224
    %v267 = vpack.c.b16 %v228, %v225
    %v268 = vpack.c.b16 %v229, %v226
    %v269 = vpack.c.b16 %v233, %v230
    %v270 = vpack.c.b16 %v234, %v231
    %v271 = vpack.c.b16 %v235, %v232
    %v272 = vpack.c.b16 %v239, %v236
    %v273 = vpack.c.b16 %v240, %v237
    %v274 = vpack.c.b16 %v241, %v238
    %v275 = vpack.c.b16 %v245, %v242
    %v276 = vpack.c.b16 %v246, %v243
    %v277 = vpack.c.b16 %v247, %v244
    %v278 = vpack.c.b16 %v251, %v248
    %v279 = vpack.c.b16 %v252, %v249
    %v280 = vpack.c.b16 %v253, %v250
    %v281 = vpack.c.b16 %v257, %v254
    %v282 = vpack.c.b16 %v258, %v255
    %v283 = vpack.c.b16 %v259, %v256
    %308 = vmatpush.bf16.msra.mxu0 %v281
    %309 = vmatpush.bf16.msra.mxu0 %v278
    %310 = vmatpush.bf16.msra.mxu0 %v275
    %311 = vmatpush.bf16.msra.mxu0 %v272
    %312 = vmatpush.bf16.msra.mxu0 %v269
    %313 = vmatpush.bf16.msra.mxu0 %v266
    %314 = vmatpush.bf16.msra.mxu0 %v263
    %315 = vmatpush.bf16.msra.mxu0 %v260
    %316 = vmatmul.bf16.gmra.mxu0 %v139
    %v317 = vpop.f32.mrf.mxu0
    %v318 = vadd.f32 %v174, %v317
    %v319 = vpop.f32.mrf.mxu0
    %320 = vdwg.mxu0
    %321 = vmatpush.bf16.msra.mxu0 %v282
    %322 = vmatpush.bf16.msra.mxu0 %v279
    %323 = vmatpush.bf16.msra.mxu0 %v276
    %324 = vmatpush.bf16.msra.mxu0 %v273
    %325 = vmatpush.bf16.msra.mxu0 %v270
    %326 = vmatpush.bf16.msra.mxu0 %v267
    %327 = vmatpush.bf16.msra.mxu0 %v264
    %328 = vmatpush.bf16.msra.mxu0 %v261
    %329 = vmatmul.bf16.gmra.mxu0 %v139
    %v330 = vpop.f32.mrf.mxu0
    %v331 = vadd.f32 %v175, %v330
    %v332 = vpop.f32.mrf.mxu0
    %333 = vdwg.mxu0
    %334 = vmatpush.bf16.msra.mxu0 %v283
    %335 = vmatpush.bf16.msra.mxu0 %v280
    %336 = vmatpush.bf16.msra.mxu0 %v277
    %337 = vmatpush.bf16.msra.mxu0 %v274
    %338 = vmatpush.bf16.msra.mxu0 %v271
    %339 = vmatpush.bf16.msra.mxu0 %v268
    %340 = vmatpush.bf16.msra.mxu0 %v265
    %341 = vmatpush.bf16.msra.mxu0 %v262
    %342 = vmatmul.bf16.gmra.mxu0 %v139
    %v343 = vpop.f32.mrf.mxu0
    %v344 = vadd.f32 %v176, %v343
    %v345 = vpop.f32.mrf.mxu0
    %346 = vdwg.mxu0
    %s347 = scalar_lea.vmem [#allocation5], 8
    %v348 = vld [vmem:[%s347] sm:$0xff]
    %v349 = vmul.f32 %v348, %v135
    %v350 = vpack.c.bf16 %v349, %v349
    %v351 = vld [vmem:[#allocation11] sm:$0xff]
    %v352 = vld [vmem:[#allocation11 + $0x8] sm:$0xf]
    %v353 = vld [vmem:[#allocation11 + $0xc] sm:$0xff]
    %v354 = vld [vmem:[#allocation11 + $0x14] sm:$0xf]
    %v355 = vld [vmem:[#allocation11 + $0x18] sm:$0xff]
    %v356 = vld [vmem:[#allocation11 + $0x20] sm:$0xf]
    %v357 = vld [vmem:[#allocation11 + $0x24] sm:$0xff]
    %v358 = vld [vmem:[#allocation11 + $0x2c] sm:$0xf]
    %v359 = vld [vmem:[#allocation11 + $0x30] sm:$0xff]
    %v360 = vld [vmem:[#allocation11 + $0x38] sm:$0xf]
    %v361 = vld [vmem:[#allocation11 + $0x3c] sm:$0xff]
    %v362 = vld [vmem:[#allocation11 + $0x44] sm:$0xf]
    %v363 = vld [vmem:[#allocation11 + $0x48] sm:$0xff]
    %v364 = vld [vmem:[#allocation11 + $0x50] sm:$0xf]
    %v365 = vld [vmem:[#allocation11 + $0x54] sm:$0xff]
    %v366 = vld [vmem:[#allocation11 + $0x5c] sm:$0xf]
    %v367 = vld [vmem:[#allocation11 + $0x60] sm:$0xff]
    %v368 = vld [vmem:[#allocation11 + $0x68] sm:$0xf]
    %v369 = vld [vmem:[#allocation11 + $0x6c] sm:$0xff]
    %v370 = vld [vmem:[#allocation11 + $0x74] sm:$0xf]
    %v371 = vld [vmem:[#allocation11 + $0x78] sm:$0xff]
    %v372 = vld [vmem:[#allocation11 + $0x80] sm:$0xf]
    %v373 = vld [vmem:[#allocation11 + $0x84] sm:$0xff]
    %v374 = vld [vmem:[#allocation11 + $0x8c] sm:$0xf]
    %v375 = vld [vmem:[#allocation11 + $0x90] sm:$0xff]
    %v376 = vld [vmem:[#allocation11 + $0x98] sm:$0xf]
    %v377 = vld [vmem:[#allocation11 + $0x9c] sm:$0xff]
    %v378 = vld [vmem:[#allocation11 + $0xa4] sm:$0xf]
    %v379 = vld [vmem:[#allocation11 + $0xa8] sm:$0xff]
    %v380 = vld [vmem:[#allocation11 + $0xb0] sm:$0xf]
    %v381 = vld [vmem:[#allocation11 + $0xb4] sm:$0xff]
    %v382 = vld [vmem:[#allocation11 + $0xbc] sm:$0xf]
    %v383 = vld [vmem:[%s10] sm:$0x7]
    %v385 = vperm.slane %v383, 0
    %v386 = vperm.slane %v383, 1
    %v387 = vperm.slane %v383, 2
    %v423 = vunpack.c.l.b16 %v351
    %v424 = vunpack.c.h.b16 %v351
    %v425 = vunpack.c.l.b16 %v352
    %v426 = vunpack.c.l.b16 %v353
    %v427 = vunpack.c.h.b16 %v353
    %v428 = vunpack.c.l.b16 %v354
    %v429 = vunpack.c.l.b16 %v355
    %v430 = vunpack.c.h.b16 %v355
    %v431 = vunpack.c.l.b16 %v356
    %v432 = vunpack.c.l.b16 %v357
    %v433 = vunpack.c.h.b16 %v357
    %v434 = vunpack.c.l.b16 %v358
    %v435 = vunpack.c.l.b16 %v359
    %v436 = vunpack.c.h.b16 %v359
    %v437 = vunpack.c.l.b16 %v360
    %v438 = vunpack.c.l.b16 %v361
    %v439 = vunpack.c.h.b16 %v361
    %v440 = vunpack.c.l.b16 %v362
    %v441 = vunpack.c.l.b16 %v363
    %v442 = vunpack.c.h.b16 %v363
    %v443 = vunpack.c.l.b16 %v364
    %v444 = vunpack.c.l.b16 %v365
    %v445 = vunpack.c.h.b16 %v365
    %v446 = vunpack.c.l.b16 %v366
    %v447 = vunpack.c.l.b16 %v367
    %v448 = vunpack.c.h.b16 %v367
    %v449 = vunpack.c.l.b16 %v368
    %v450 = vunpack.c.l.b16 %v369
    %v451 = vunpack.c.h.b16 %v369
    %v452 = vunpack.c.l.b16 %v370
    %v453 = vunpack.c.l.b16 %v371
    %v454 = vunpack.c.h.b16 %v371
    %v455 = vunpack.c.l.b16 %v372
    %v456 = vunpack.c.l.b16 %v373
    %v457 = vunpack.c.h.b16 %v373
    %v458 = vunpack.c.l.b16 %v374
    %v459 = vunpack.c.l.b16 %v375
    %v460 = vunpack.c.h.b16 %v375
    %v461 = vunpack.c.l.b16 %v376
    %v462 = vunpack.c.l.b16 %v377
    %v463 = vunpack.c.h.b16 %v377
    %v464 = vunpack.c.l.b16 %v378
    %v465 = vunpack.c.l.b16 %v379
    %v466 = vunpack.c.h.b16 %v379
    %v467 = vunpack.c.l.b16 %v380
    %v468 = vunpack.c.l.b16 %v381
    %v469 = vunpack.c.h.b16 %v381
    %v470 = vunpack.c.l.b16 %v382
    %v471 = vpack.c.b16 %v426, %v423
    %v472 = vpack.c.b16 %v427, %v424
    %v473 = vpack.c.b16 %v428, %v425
    %v474 = vpack.c.b16 %v432, %v429
    %v475 = vpack.c.b16 %v433, %v430
    %v476 = vpack.c.b16 %v434, %v431
    %v477 = vpack.c.b16 %v438, %v435
    %v478 = vpack.c.b16 %v439, %v436
    %v479 = vpack.c.b16 %v440, %v437
    %v480 = vpack.c.b16 %v444, %v441
    %v481 = vpack.c.b16 %v445, %v442
    %v482 = vpack.c.b16 %v446, %v443
    %v483 = vpack.c.b16 %v450, %v447
    %v484 = vpack.c.b16 %v451, %v448
    %v485 = vpack.c.b16 %v452, %v449
    %v486 = vpack.c.b16 %v456, %v453
    %v487 = vpack.c.b16 %v457, %v454
    %v488 = vpack.c.b16 %v458, %v455
    %v489 = vpack.c.b16 %v462, %v459
    %v490 = vpack.c.b16 %v463, %v460
    %v491 = vpack.c.b16 %v464, %v461
    %v492 = vpack.c.b16 %v468, %v465
    %v493 = vpack.c.b16 %v469, %v466
    %v494 = vpack.c.b16 %v470, %v467
    %519 = vmatpush.bf16.msra.mxu0 %v492
    %520 = vmatpush.bf16.msra.mxu0 %v489
    %521 = vmatpush.bf16.msra.mxu0 %v486
    %522 = vmatpush.bf16.msra.mxu0 %v483
    %523 = vmatpush.bf16.msra.mxu0 %v480
    %524 = vmatpush.bf16.msra.mxu0 %v477
    %525 = vmatpush.bf16.msra.mxu0 %v474
    %526 = vmatpush.bf16.msra.mxu0 %v471
    %527 = vmatmul.bf16.gmra.mxu0 %v350
    %v528 = vpop.f32.mrf.mxu0
    %v529 = vadd.f32 %v385, %v528
    %v530 = vpop.f32.mrf.mxu0
    %531 = vdwg.mxu0
    %532 = vmatpush.bf16.msra.mxu0 %v493
    %533 = vmatpush.bf16.msra.mxu0 %v490
    %534 = vmatpush.bf16.msra.mxu0 %v487
    %535 = vmatpush.bf16.msra.mxu0 %v484
    %536 = vmatpush.bf16.msra.mxu0 %v481
    %537 = vmatpush.bf16.msra.mxu0 %v478
    %538 = vmatpush.bf16.msra.mxu0 %v475
    %539 = vmatpush.bf16.msra.mxu0 %v472
    %540 = vmatmul.bf16.gmra.mxu0 %v350
    %v541 = vpop.f32.mrf.mxu0
    %v542 = vadd.f32 %v386, %v541
    %v543 = vpop.f32.mrf.mxu0
    %544 = vdwg.mxu0
    %545 = vmatpush.bf16.msra.mxu0 %v494
    %546 = vmatpush.bf16.msra.mxu0 %v491
    %547 = vmatpush.bf16.msra.mxu0 %v488
    %548 = vmatpush.bf16.msra.mxu0 %v485
    %549 = vmatpush.bf16.msra.mxu0 %v482
    %550 = vmatpush.bf16.msra.mxu0 %v479
    %551 = vmatpush.bf16.msra.mxu0 %v476
    %552 = vmatpush.bf16.msra.mxu0 %v473
    %553 = vmatmul.bf16.gmra.mxu0 %v350
    %v554 = vpop.f32.mrf.mxu0
    %v555 = vadd.f32 %v387, %v554
    %v556 = vpop.f32.mrf.mxu0
    %557 = vdwg.mxu0
    %v558 = vld [vmem:[#allocation2] sm:$0xff]
    %v559 = vld [vmem:[#allocation2 + $0x8] sm:$0xff]
    %v560 = vpack.c.bf16 %v558, %v558
    %v561 = vpack.c.bf16 %v559, %v559
    %v562 = vld [vmem:[#allocation7] sm:$0xff]
    %v563 = vld [vmem:[#allocation7 + $0x8] sm:$0xf]
    %v564 = vld [vmem:[#allocation7 + $0xc] sm:$0xff]
    %v565 = vld [vmem:[#allocation7 + $0x14] sm:$0xf]
    %v566 = vld [vmem:[#allocation7 + $0x18] sm:$0xff]
    %v567 = vld [vmem:[#allocation7 + $0x20] sm:$0xf]
    %v568 = vld [vmem:[#allocation7 + $0x24] sm:$0xff]
    %v569 = vld [vmem:[#allocation7 + $0x2c] sm:$0xf]
    %v570 = vld [vmem:[#allocation7 + $0x30] sm:$0xff]
    %v571 = vld [vmem:[#allocation7 + $0x38] sm:$0xf]
    %v572 = vld [vmem:[#allocation7 + $0x3c] sm:$0xff]
    %v573 = vld [vmem:[#allocation7 + $0x44] sm:$0xf]
    %v574 = vld [vmem:[#allocation7 + $0x48] sm:$0xff]
    %v575 = vld [vmem:[#allocation7 + $0x50] sm:$0xf]
    %v576 = vld [vmem:[#allocation7 + $0x54] sm:$0xff]
    %v577 = vld [vmem:[#allocation7 + $0x5c] sm:$0xf]
    %v578 = vld [vmem:[#allocation7 + $0x60] sm:$0xff]
    %v579 = vld [vmem:[#allocation7 + $0x68] sm:$0xf]
    %v580 = vld [vmem:[#allocation7 + $0x6c] sm:$0xff]
    %v581 = vld [vmem:[#allocation7 + $0x74] sm:$0xf]
    %v582 = vld [vmem:[#allocation7 + $0x78] sm:$0xff]
    %v583 = vld [vmem:[#allocation7 + $0x80] sm:$0xf]
    %v584 = vld [vmem:[#allocation7 + $0x84] sm:$0xff]
    %v585 = vld [vmem:[#allocation7 + $0x8c] sm:$0xf]
    %v586 = vld [vmem:[#allocation7 + $0x90] sm:$0xff]
    %v587 = vld [vmem:[#allocation7 + $0x98] sm:$0xf]
    %v588 = vld [vmem:[#allocation7 + $0x9c] sm:$0xff]
    %v589 = vld [vmem:[#allocation7 + $0xa4] sm:$0xf]
    %v590 = vld [vmem:[#allocation7 + $0xa8] sm:$0xff]
    %v591 = vld [vmem:[#allocation7 + $0xb0] sm:$0xf]
    %v592 = vld [vmem:[#allocation7 + $0xb4] sm:$0xff]
    %v593 = vld [vmem:[#allocation7 + $0xbc] sm:$0xf]
    %v594 = vld [vmem:[#allocation7 + $0xc0] sm:$0xff]
    %v595 = vld [vmem:[#allocation7 + $0xc8] sm:$0xf]
    %v596 = vld [vmem:[#allocation7 + $0xcc] sm:$0xff]
    %v597 = vld [vmem:[#allocation7 + $0xd4] sm:$0xf]
    %v598 = vld [vmem:[#allocation7 + $0xd8] sm:$0xff]
    %v599 = vld [vmem:[#allocation7 + $0xe0] sm:$0xf]
    %v600 = vld [vmem:[#allocation7 + $0xe4] sm:$0xff]
    %v601 = vld [vmem:[#allocation7 + $0xec] sm:$0xf]
    %v602 = vld [vmem:[#allocation7 + $0xf0] sm:$0xff]
    %v603 = vld [vmem:[#allocation7 + $0xf8] sm:$0xf]
    %v604 = vld [vmem:[#allocation7 + $0xfc] sm:$0xff]
    %v605 = vld [vmem:[#allocation7 + $0x104] sm:$0xf]
    %v606 = vld [vmem:[#allocation7 + $0x108] sm:$0xff]
    %v607 = vld [vmem:[#allocation7 + $0x110] sm:$0xf]
    %v608 = vld [vmem:[#allocation7 + $0x114] sm:$0xff]
    %v609 = vld [vmem:[#allocation7 + $0x11c] sm:$0xf]
    %v610 = vld [vmem:[#allocation7 + $0x120] sm:$0xff]
    %v611 = vld [vmem:[#allocation7 + $0x128] sm:$0xf]
    %v612 = vld [vmem:[#allocation7 + $0x12c] sm:$0xff]
    %v613 = vld [vmem:[#allocation7 + $0x134] sm:$0xf]
    %v614 = vld [vmem:[#allocation7 + $0x138] sm:$0xff]
    %v615 = vld [vmem:[#allocation7 + $0x140] sm:$0xf]
    %v616 = vld [vmem:[#allocation7 + $0x144] sm:$0xff]
    %v617 = vld [vmem:[#allocation7 + $0x14c] sm:$0xf]
    %v618 = vld [vmem:[#allocation7 + $0x150] sm:$0xff]
    %v619 = vld [vmem:[#allocation7 + $0x158] sm:$0xf]
    %v620 = vld [vmem:[#allocation7 + $0x15c] sm:$0xff]
    %v621 = vld [vmem:[#allocation7 + $0x164] sm:$0xf]
    %v622 = vld [vmem:[#allocation7 + $0x168] sm:$0xff]
    %v623 = vld [vmem:[#allocation7 + $0x170] sm:$0xf]
    %v624 = vld [vmem:[#allocation7 + $0x174] sm:$0xff]
    %v625 = vld [vmem:[#allocation7 + $0x17c] sm:$0xf]
    %v626 = vld [vmem:[%s5] sm:$0x7]
    %v628 = vperm.slane %v626, 0
    %v629 = vperm.slane %v626, 1
    %v630 = vperm.slane %v626, 2
    %v698 = vunpack.c.l.b16 %v562
    %v699 = vunpack.c.h.b16 %v562
    %v700 = vunpack.c.l.b16 %v563
    %v701 = vunpack.c.l.b16 %v564
    %v702 = vunpack.c.h.b16 %v564
    %v703 = vunpack.c.l.b16 %v565
    %v704 = vunpack.c.l.b16 %v566
    %v705 = vunpack.c.h.b16 %v566
    %v706 = vunpack.c.l.b16 %v567
    %v707 = vunpack.c.l.b16 %v568
    %v708 = vunpack.c.h.b16 %v568
    %v709 = vunpack.c.l.b16 %v569
    %v710 = vunpack.c.l.b16 %v570
    %v711 = vunpack.c.h.b16 %v570
    %v712 = vunpack.c.l.b16 %v571
    %v713 = vunpack.c.l.b16 %v572
    %v714 = vunpack.c.h.b16 %v572
    %v715 = vunpack.c.l.b16 %v573
    %v716 = vunpack.c.l.b16 %v574
    %v717 = vunpack.c.h.b16 %v574
    %v718 = vunpack.c.l.b16 %v575
    %v719 = vunpack.c.l.b16 %v576
    %v720 = vunpack.c.h.b16 %v576
    %v721 = vunpack.c.l.b16 %v577
    %v722 = vunpack.c.l.b16 %v578
    %v723 = vunpack.c.h.b16 %v578
    %v724 = vunpack.c.l.b16 %v579
    %v725 = vunpack.c.l.b16 %v580
    %v726 = vunpack.c.h.b16 %v580
    %v727 = vunpack.c.l.b16 %v581
    %v728 = vunpack.c.l.b16 %v582
    %v729 = vunpack.c.h.b16 %v582
    %v730 = vunpack.c.l.b16 %v583
    %v731 = vunpack.c.l.b16 %v584
    %v732 = vunpack.c.h.b16 %v584
    %v733 = vunpack.c.l.b16 %v585
    %v734 = vunpack.c.l.b16 %v586
    %v735 = vunpack.c.h.b16 %v586
    %v736 = vunpack.c.l.b16 %v587
    %v737 = vunpack.c.l.b16 %v588
    %v738 = vunpack.c.h.b16 %v588
    %v739 = vunpack.c.l.b16 %v589
    %v740 = vunpack.c.l.b16 %v590
    %v741 = vunpack.c.h.b16 %v590
    %v742 = vunpack.c.l.b16 %v591
    %v743 = vunpack.c.l.b16 %v592
    %v744 = vunpack.c.h.b16 %v592
    %v745 = vunpack.c.l.b16 %v593
    %v746 = vunpack.c.l.b16 %v594
    %v747 = vunpack.c.h.b16 %v594
    %v748 = vunpack.c.l.b16 %v595
    %v749 = vunpack.c.l.b16 %v596
    %v750 = vunpack.c.h.b16 %v596
    %v751 = vunpack.c.l.b16 %v597
    %v752 = vunpack.c.l.b16 %v598
    %v753 = vunpack.c.h.b16 %v598
    %v754 = vunpack.c.l.b16 %v599
    %v755 = vunpack.c.l.b16 %v600
    %v756 = vunpack.c.h.b16 %v600
    %v757 = vunpack.c.l.b16 %v601
    %v758 = vunpack.c.l.b16 %v602
    %v759 = vunpack.c.h.b16 %v602
    %v760 = vunpack.c.l.b16 %v603
    %v761 = vunpack.c.l.b16 %v604
    %v762 = vunpack.c.h.b16 %v604
    %v763 = vunpack.c.l.b16 %v605
    %v764 = vunpack.c.l.b16 %v606
    %v765 = vunpack.c.h.b16 %v606
    %v766 = vunpack.c.l.b16 %v607
    %v767 = vunpack.c.l.b16 %v608
    %v768 = vunpack.c.h.b16 %v608
    %v769 = vunpack.c.l.b16 %v609
    %v770 = vunpack.c.l.b16 %v610
    %v771 = vunpack.c.h.b16 %v610
    %v772 = vunpack.c.l.b16 %v611
    %v773 = vunpack.c.l.b16 %v612
    %v774 = vunpack.c.h.b16 %v612
    %v775 = vunpack.c.l.b16 %v613
    %v776 = vunpack.c.l.b16 %v614
    %v777 = vunpack.c.h.b16 %v614
    %v778 = vunpack.c.l.b16 %v615
    %v779 = vunpack.c.l.b16 %v616
    %v780 = vunpack.c.h.b16 %v616
    %v781 = vunpack.c.l.b16 %v617
    %v782 = vunpack.c.l.b16 %v618
    %v783 = vunpack.c.h.b16 %v618
    %v784 = vunpack.c.l.b16 %v619
    %v785 = vunpack.c.l.b16 %v620
    %v786 = vunpack.c.h.b16 %v620
    %v787 = vunpack.c.l.b16 %v621
    %v788 = vunpack.c.l.b16 %v622
    %v789 = vunpack.c.h.b16 %v622
    %v790 = vunpack.c.l.b16 %v623
    %v791 = vunpack.c.l.b16 %v624
    %v792 = vunpack.c.h.b16 %v624
    %v793 = vunpack.c.l.b16 %v625
    %v794 = vpack.c.b16 %v701, %v698
    %v795 = vpack.c.b16 %v702, %v699
    %v796 = vpack.c.b16 %v703, %v700
    %v797 = vpack.c.b16 %v707, %v704
    %v798 = vpack.c.b16 %v708, %v705
    %v799 = vpack.c.b16 %v709, %v706
    %v800 = vpack.c.b16 %v713, %v710
    %v801 = vpack.c.b16 %v714, %v711
    %v802 = vpack.c.b16 %v715, %v712
    %v803 = vpack.c.b16 %v719, %v716
    %v804 = vpack.c.b16 %v720, %v717
    %v805 = vpack.c.b16 %v721, %v718
    %v806 = vpack.c.b16 %v725, %v722
    %v807 = vpack.c.b16 %v726, %v723
    %v808 = vpack.c.b16 %v727, %v724
    %v809 = vpack.c.b16 %v731, %v728
    %v810 = vpack.c.b16 %v732, %v729
    %v811 = vpack.c.b16 %v733, %v730
    %v812 = vpack.c.b16 %v737, %v734
    %v813 = vpack.c.b16 %v738, %v735
    %v814 = vpack.c.b16 %v739, %v736
    %v815 = vpack.c.b16 %v743, %v740
    %v816 = vpack.c.b16 %v744, %v741
    %v817 = vpack.c.b16 %v745, %v742
    %v818 = vpack.c.b16 %v749, %v746
    %v819 = vpack.c.b16 %v750, %v747
    %v820 = vpack.c.b16 %v751, %v748
    %v821 = vpack.c.b16 %v755, %v752
    %v822 = vpack.c.b16 %v756, %v753
    %v823 = vpack.c.b16 %v757, %v754
    %v824 = vpack.c.b16 %v761, %v758
    %v825 = vpack.c.b16 %v762, %v759
    %v826 = vpack.c.b16 %v763, %v760
    %v827 = vpack.c.b16 %v767, %v764
    %v828 = vpack.c.b16 %v768, %v765
    %v829 = vpack.c.b16 %v769, %v766
    %v830 = vpack.c.b16 %v773, %v770
    %v831 = vpack.c.b16 %v774, %v771
    %v832 = vpack.c.b16 %v775, %v772
    %v833 = vpack.c.b16 %v779, %v776
    %v834 = vpack.c.b16 %v780, %v777
    %v835 = vpack.c.b16 %v781, %v778
    %v836 = vpack.c.b16 %v785, %v782
    %v837 = vpack.c.b16 %v786, %v783
    %v838 = vpack.c.b16 %v787, %v784
    %v839 = vpack.c.b16 %v791, %v788
    %v840 = vpack.c.b16 %v792, %v789
    %v841 = vpack.c.b16 %v793, %v790
    %890 = vmatpush.bf16.msra.mxu0 %v815
    %891 = vmatpush.bf16.msra.mxu0 %v812
    %892 = vmatpush.bf16.msra.mxu0 %v809
    %893 = vmatpush.bf16.msra.mxu0 %v806
    %894 = vmatpush.bf16.msra.mxu0 %v803
    %895 = vmatpush.bf16.msra.mxu0 %v800
    %896 = vmatpush.bf16.msra.mxu0 %v797
    %897 = vmatpush.bf16.msra.mxu0 %v794
    %898 = vmatmul.bf16.gmra.mxu0 %v560
    %v899 = vpop.f32.mrf.mxu0
    %v900 = vadd.f32 %v628, %v899
    %v901 = vpop.f32.mrf.mxu0
    %902 = vdwg.mxu0
    %903 = vmatpush.bf16.msra.mxu0 %v839
    %904 = vmatpush.bf16.msra.mxu0 %v836
    %905 = vmatpush.bf16.msra.mxu0 %v833
    %906 = vmatpush.bf16.msra.mxu0 %v830
    %907 = vmatpush.bf16.msra.mxu0 %v827
    %908 = vmatpush.bf16.msra.mxu0 %v824
    %909 = vmatpush.bf16.msra.mxu0 %v821
    %910 = vmatpush.bf16.msra.mxu0 %v818
    %911 = vmatmul.bf16.gmra.mxu0 %v561
    %v912 = vpop.f32.mrf.mxu0
    %v913 = vadd.f32 %v900, %v912
    %v914 = vpop.f32.mrf.mxu0
    %915 = vdwg.mxu0
    %916 = vmatpush.bf16.msra.mxu0 %v816
    %917 = vmatpush.bf16.msra.mxu0 %v813
    %918 = vmatpush.bf16.msra.mxu0 %v810
    %919 = vmatpush.bf16.msra.mxu0 %v807
    %920 = vmatpush.bf16.msra.mxu0 %v804
    %921 = vmatpush.bf16.msra.mxu0 %v801
    %922 = vmatpush.bf16.msra.mxu0 %v798
    %923 = vmatpush.bf16.msra.mxu0 %v795
    %924 = vmatmul.bf16.gmra.mxu0 %v560
    %v925 = vpop.f32.mrf.mxu0
    %v926 = vadd.f32 %v629, %v925
    %v927 = vpop.f32.mrf.mxu0
    %928 = vdwg.mxu0
    %929 = vmatpush.bf16.msra.mxu0 %v840
    %930 = vmatpush.bf16.msra.mxu0 %v837
    %931 = vmatpush.bf16.msra.mxu0 %v834
    %932 = vmatpush.bf16.msra.mxu0 %v831
    %933 = vmatpush.bf16.msra.mxu0 %v828
    %934 = vmatpush.bf16.msra.mxu0 %v825
    %935 = vmatpush.bf16.msra.mxu0 %v822
    %936 = vmatpush.bf16.msra.mxu0 %v819
    %937 = vmatmul.bf16.gmra.mxu0 %v561
    %v938 = vpop.f32.mrf.mxu0
    %v939 = vadd.f32 %v926, %v938
    %v940 = vpop.f32.mrf.mxu0
    %941 = vdwg.mxu0
    %942 = vmatpush.bf16.msra.mxu0 %v817
    %943 = vmatpush.bf16.msra.mxu0 %v814
    %944 = vmatpush.bf16.msra.mxu0 %v811
    %945 = vmatpush.bf16.msra.mxu0 %v808
    %946 = vmatpush.bf16.msra.mxu0 %v805
    %947 = vmatpush.bf16.msra.mxu0 %v802
    %948 = vmatpush.bf16.msra.mxu0 %v799
    %949 = vmatpush.bf16.msra.mxu0 %v796
    %950 = vmatmul.bf16.gmra.mxu0 %v560
    %v951 = vpop.f32.mrf.mxu0
    %v952 = vadd.f32 %v630, %v951
    %v953 = vpop.f32.mrf.mxu0
    %954 = vdwg.mxu0
    %955 = vmatpush.bf16.msra.mxu0 %v841
    %956 = vmatpush.bf16.msra.mxu0 %v838
    %957 = vmatpush.bf16.msra.mxu0 %v835
    %958 = vmatpush.bf16.msra.mxu0 %v832
    %959 = vmatpush.bf16.msra.mxu0 %v829
    %960 = vmatpush.bf16.msra.mxu0 %v826
    %961 = vmatpush.bf16.msra.mxu0 %v823
    %962 = vmatpush.bf16.msra.mxu0 %v820
    %963 = vmatmul.bf16.gmra.mxu0 %v561
    %v964 = vpop.f32.mrf.mxu0
    %v965 = vadd.f32 %v952, %v964
    %v966 = vpop.f32.mrf.mxu0
    %967 = vdwg.mxu0
    %v968 = vadd.f32 %v913, %v318
    %v969 = vsub.f32 0.0, %v968
    %v970 = vmul.f32 %v969, 1.442695
    %v971 = vpow.pop %v970
    %v972 = vadd.f32 %v971, 1.0
    %v973 = vrcp.pop %v972
    %v974 = vadd.f32 %v939, %v331
    %v975 = vsub.f32 0.0, %v974
    %v976 = vmul.f32 %v975, 1.442695
    %v977 = vpow.pop %v976
    %v978 = vadd.f32 %v977, 1.0
    %v979 = vrcp.pop %v978
    %v980 = vmul.f32 %v973, %v344
    %v981 = vadd.f32 %v965, %v980
    %v982 = vtanh.pop %v981
    %v983 = vsub.f32 1.0, %v979
    %v984 = vmul.f32 %v983, %v982
    %v985 = vmul.f32 %v979, %v138
    %v986 = vadd.f32 %v984, %v985
    %987 = vst [vmem:[#allocation13] sm:$0xff] %v986
    %v988 = vpack.c.bf16 %v986, %v986
    %v989 = vld [vmem:[#allocation10] sm:$0xff]
    %v990 = vld [vmem:[#allocation10 + $0x8] sm:$0xf]
    %v991 = vld [vmem:[#allocation10 + $0xc] sm:$0xff]
    %v992 = vld [vmem:[#allocation10 + $0x14] sm:$0xf]
    %v993 = vld [vmem:[#allocation10 + $0x18] sm:$0xff]
    %v994 = vld [vmem:[#allocation10 + $0x20] sm:$0xf]
    %v995 = vld [vmem:[#allocation10 + $0x24] sm:$0xff]
    %v996 = vld [vmem:[#allocation10 + $0x2c] sm:$0xf]
    %v997 = vld [vmem:[#allocation10 + $0x30] sm:$0xff]
    %v998 = vld [vmem:[#allocation10 + $0x38] sm:$0xf]
    %v999 = vld [vmem:[#allocation10 + $0x3c] sm:$0xff]
    %v1000 = vld [vmem:[#allocation10 + $0x44] sm:$0xf]
    %v1001 = vld [vmem:[#allocation10 + $0x48] sm:$0xff]
    %v1002 = vld [vmem:[#allocation10 + $0x50] sm:$0xf]
    %v1003 = vld [vmem:[#allocation10 + $0x54] sm:$0xff]
    %v1004 = vld [vmem:[#allocation10 + $0x5c] sm:$0xf]
    %v1005 = vld [vmem:[#allocation10 + $0x60] sm:$0xff]
    %v1006 = vld [vmem:[#allocation10 + $0x68] sm:$0xf]
    %v1007 = vld [vmem:[#allocation10 + $0x6c] sm:$0xff]
    %v1008 = vld [vmem:[#allocation10 + $0x74] sm:$0xf]
    %v1009 = vld [vmem:[#allocation10 + $0x78] sm:$0xff]
    %v1010 = vld [vmem:[#allocation10 + $0x80] sm:$0xf]
    %v1011 = vld [vmem:[#allocation10 + $0x84] sm:$0xff]
    %v1012 = vld [vmem:[#allocation10 + $0x8c] sm:$0xf]
    %v1013 = vld [vmem:[#allocation10 + $0x90] sm:$0xff]
    %v1014 = vld [vmem:[#allocation10 + $0x98] sm:$0xf]
    %v1015 = vld [vmem:[#allocation10 + $0x9c] sm:$0xff]
    %v1016 = vld [vmem:[#allocation10 + $0xa4] sm:$0xf]
    %v1017 = vld [vmem:[#allocation10 + $0xa8] sm:$0xff]
    %v1018 = vld [vmem:[#allocation10 + $0xb0] sm:$0xf]
    %v1019 = vld [vmem:[#allocation10 + $0xb4] sm:$0xff]
    %v1020 = vld [vmem:[#allocation10 + $0xbc] sm:$0xf]
    %v1021 = vld [vmem:[%s9] sm:$0x7]
    %v1023 = vperm.slane %v1021, 0
    %v1024 = vperm.slane %v1021, 1
    %v1025 = vperm.slane %v1021, 2
    %v1061 = vunpack.c.l.b16 %v989
    %v1062 = vunpack.c.h.b16 %v989
    %v1063 = vunpack.c.l.b16 %v990
    %v1064 = vunpack.c.l.b16 %v991
    %v1065 = vunpack.c.h.b16 %v991
    %v1066 = vunpack.c.l.b16 %v992
    %v1067 = vunpack.c.l.b16 %v993
    %v1068 = vunpack.c.h.b16 %v993
    %v1069 = vunpack.c.l.b16 %v994
    %v1070 = vunpack.c.l.b16 %v995
    %v1071 = vunpack.c.h.b16 %v995
    %v1072 = vunpack.c.l.b16 %v996
    %v1073 = vunpack.c.l.b16 %v997
    %v1074 = vunpack.c.h.b16 %v997
    %v1075 = vunpack.c.l.b16 %v998
    %v1076 = vunpack.c.l.b16 %v999
    %v1077 = vunpack.c.h.b16 %v999
    %v1078 = vunpack.c.l.b16 %v1000
    %v1079 = vunpack.c.l.b16 %v1001
    %v1080 = vunpack.c.h.b16 %v1001
    %v1081 = vunpack.c.l.b16 %v1002
    %v1082 = vunpack.c.l.b16 %v1003
    %v1083 = vunpack.c.h.b16 %v1003
    %v1084 = vunpack.c.l.b16 %v1004
    %v1085 = vunpack.c.l.b16 %v1005
    %v1086 = vunpack.c.h.b16 %v1005
    %v1087 = vunpack.c.l.b16 %v1006
    %v1088 = vunpack.c.l.b16 %v1007
    %v1089 = vunpack.c.h.b16 %v1007
    %v1090 = vunpack.c.l.b16 %v1008
    %v1091 = vunpack.c.l.b16 %v1009
    %v1092 = vunpack.c.h.b16 %v1009
    %v1093 = vunpack.c.l.b16 %v1010
    %v1094 = vunpack.c.l.b16 %v1011
    %v1095 = vunpack.c.h.b16 %v1011
    %v1096 = vunpack.c.l.b16 %v1012
    %v1097 = vunpack.c.l.b16 %v1013
    %v1098 = vunpack.c.h.b16 %v1013
    %v1099 = vunpack.c.l.b16 %v1014
    %v1100 = vunpack.c.l.b16 %v1015
    %v1101 = vunpack.c.h.b16 %v1015
    %v1102 = vunpack.c.l.b16 %v1016
    %v1103 = vunpack.c.l.b16 %v1017
    %v1104 = vunpack.c.h.b16 %v1017
    %v1105 = vunpack.c.l.b16 %v1018
    %v1106 = vunpack.c.l.b16 %v1019
    %v1107 = vunpack.c.h.b16 %v1019
    %v1108 = vunpack.c.l.b16 %v1020
    %v1109 = vpack.c.b16 %v1064, %v1061
    %v1110 = vpack.c.b16 %v1065, %v1062
    %v1111 = vpack.c.b16 %v1066, %v1063
    %v1112 = vpack.c.b16 %v1070, %v1067
    %v1113 = vpack.c.b16 %v1071, %v1068
    %v1114 = vpack.c.b16 %v1072, %v1069
    %v1115 = vpack.c.b16 %v1076, %v1073
    %v1116 = vpack.c.b16 %v1077, %v1074
    %v1117 = vpack.c.b16 %v1078, %v1075
    %v1118 = vpack.c.b16 %v1082, %v1079
    %v1119 = vpack.c.b16 %v1083, %v1080
    %v1120 = vpack.c.b16 %v1084, %v1081
    %v1121 = vpack.c.b16 %v1088, %v1085
    %v1122 = vpack.c.b16 %v1089, %v1086
    %v1123 = vpack.c.b16 %v1090, %v1087
    %v1124 = vpack.c.b16 %v1094, %v1091
    %v1125 = vpack.c.b16 %v1095, %v1092
    %v1126 = vpack.c.b16 %v1096, %v1093
    %v1127 = vpack.c.b16 %v1100, %v1097
    %v1128 = vpack.c.b16 %v1101, %v1098
    %v1129 = vpack.c.b16 %v1102, %v1099
    %v1130 = vpack.c.b16 %v1106, %v1103
    %v1131 = vpack.c.b16 %v1107, %v1104
    %v1132 = vpack.c.b16 %v1108, %v1105
    %1157 = vmatpush.bf16.msra.mxu0 %v1130
    %1158 = vmatpush.bf16.msra.mxu0 %v1127
    %1159 = vmatpush.bf16.msra.mxu0 %v1124
    %1160 = vmatpush.bf16.msra.mxu0 %v1121
    %1161 = vmatpush.bf16.msra.mxu0 %v1118
    %1162 = vmatpush.bf16.msra.mxu0 %v1115
    %1163 = vmatpush.bf16.msra.mxu0 %v1112
    %1164 = vmatpush.bf16.msra.mxu0 %v1109
    %1165 = vmatmul.bf16.gmra.mxu0 %v988
    %v1166 = vpop.f32.mrf.mxu0
    %v1167 = vadd.f32 %v1023, %v1166
    %v1168 = vpop.f32.mrf.mxu0
    %1169 = vdwg.mxu0
    %1170 = vmatpush.bf16.msra.mxu0 %v1131
    %1171 = vmatpush.bf16.msra.mxu0 %v1128
    %1172 = vmatpush.bf16.msra.mxu0 %v1125
    %1173 = vmatpush.bf16.msra.mxu0 %v1122
    %1174 = vmatpush.bf16.msra.mxu0 %v1119
    %1175 = vmatpush.bf16.msra.mxu0 %v1116
    %1176 = vmatpush.bf16.msra.mxu0 %v1113
    %1177 = vmatpush.bf16.msra.mxu0 %v1110
    %1178 = vmatmul.bf16.gmra.mxu0 %v988
    %v1179 = vpop.f32.mrf.mxu0
    %v1180 = vadd.f32 %v1024, %v1179
    %v1181 = vpop.f32.mrf.mxu0
    %1182 = vdwg.mxu0
    %1183 = vmatpush.bf16.msra.mxu0 %v1132
    %1184 = vmatpush.bf16.msra.mxu0 %v1129
    %1185 = vmatpush.bf16.msra.mxu0 %v1126
    %1186 = vmatpush.bf16.msra.mxu0 %v1123
    %1187 = vmatpush.bf16.msra.mxu0 %v1120
    %1188 = vmatpush.bf16.msra.mxu0 %v1117
    %1189 = vmatpush.bf16.msra.mxu0 %v1114
    %1190 = vmatpush.bf16.msra.mxu0 %v1111
    %1191 = vmatmul.bf16.gmra.mxu0 %v988
    %v1192 = vpop.f32.mrf.mxu0
    %v1193 = vadd.f32 %v1025, %v1192
    %v1194 = vpop.f32.mrf.mxu0
    %1195 = vdwg.mxu0
    %v1196 = vadd.f32 %v1167, %v529
    %v1197 = vsub.f32 0.0, %v1196
    %v1198 = vmul.f32 %v1197, 1.442695
    %v1199 = vpow.pop %v1198
    %v1200 = vadd.f32 %v1199, 1.0
    %v1201 = vrcp.pop %v1200
    %v1202 = vadd.f32 %v1180, %v542
    %v1203 = vsub.f32 0.0, %v1202
    %v1204 = vmul.f32 %v1203, 1.442695
    %v1205 = vpow.pop %v1204
    %v1206 = vadd.f32 %v1205, 1.0
    %v1207 = vrcp.pop %v1206
    %v1208 = vmul.f32 %v1201, %v555
    %v1209 = vadd.f32 %v1193, %v1208
    %v1210 = vtanh.pop %v1209
    %v1211 = vsub.f32 1.0, %v1207
    %v1212 = vmul.f32 %v1211, %v1210
    %v1213 = vmul.f32 %v1207, %v349
    %v1214 = vadd.f32 %v1212, %v1213
    %s1215 = scalar_lea.vmem [#allocation13], 8
    %1216 = vst [vmem:[%s1215] sm:$0xff] %v1214
    // Predicated region
    $region70: #{tpu_custom_call.1} parent=1 // pred_check
      _
    $region71: #{tpu_custom_call.1} parent=1 // pred_check_branch
      %1218 = sbr.rel (0) target = $region73
    $region72: #{tpu_custom_call.1} parent=1 // pred_region
      %1220 = vsyncadd [#allocation4], 0
      %s1221 = sshll.u32 [#allocation13], 4
      %s1222 = int_to_ptr.vmem [resolvable:$true] %s1221
      %s1223 = sshll.u32 %s11, 4
      %s1224 = int_to_ptr.hbm [resolvable:$true] %s1223
      %1229 = dma.vmem_to_hbm [thread:$0]  %s1222, 256, %s1224, [#allocation4], 128, 128, 8
    $region73: #{tpu_custom_call.1} parent=1 // pred_fallthru
      _
    // Predicated region
    $region74: #{tpu_custom_call.1} parent=1 // pred_check
      _
    $region75: #{tpu_custom_call.1} parent=1 // pred_check_branch
      %1231 = sbr.rel (0) target = $region77
    $region76: #{tpu_custom_call.1} parent=1 // pred_region
      %1233 = dma.done [#allocation4], 256
    $region77: #{tpu_custom_call.1} parent=1 // pred_fallthru
      _
    %1234 = vsyncpa [#allocation3], 1
    %1235 = vsyncpa [#allocation6], 1
    %1236 = vsyncpa [#allocation9], 1
    %1237 = vsyncpa [#allocation12], 1
    %1238 = vsyncpa [#allocation4], 1

</llo_original>
